<compile_context>
chip_gen: v7x
topology: tpu7x:2x2x1
jax: 0.10.0
libtpu: 0.0.40
codegen_flags: <defaults>
</compile_context>

<pallas_src>
import jax
import jax.numpy as jnp
import numpy as np
from jax.experimental import pallas as pl
from jax.experimental.pallas import tpu as pltpu


def cls_concat_linear_kernel(cls_ref, w_ref, b_ref, logits_ref, enc_ref):
    # cls_ref    : (L, B, H)   per-layer CLS features, layer l = outs[-(l+1)]
    # w_ref      : (K, N_pad)  pre-transposed, lane-padded fcl1 weight (K = L*H)
    # b_ref      : (1, N_pad)  lane-padded bias
    # logits_ref : (B, N_pad)  padded logits (output)
    # enc_ref    : (B, K)      concatenated CLS features (output)
    L = cls_ref.shape[0]
    # Fused torch.cat([...], dim=-1): static unrolled VMEM concat (no XLU).
    x = jnp.concatenate([cls_ref[l] for l in range(L)], axis=-1)   # (B, K)
    enc_ref[...] = x
    # Eval-mode dropout is the identity; single MXU matmul + bias.
    logits_ref[...] = (
        jnp.dot(x, w_ref[...], preferred_element_type=jnp.float32)
        + b_ref[...]
    ).astype(logits_ref.dtype)


def classification_forward(hidden_states, w, b):
    """hidden_states: (L, B, S, H) f32, layer order [outs[-1], outs[-2], ...]
       w: (n_labels, L*H) f32 (PyTorch nn.Linear weight layout)
       b: (n_labels,) f32
       returns (logits (B, n_labels), encoder_out (B, L*H))"""
    L, B, S, H = hidden_states.shape
    n_labels = w.shape[0]
    K = L * H

    # Step 2 (CLS slice) in the wrapper: the kernel only ever DMAs B*K floats.
    cls = hidden_states[:, :, 0, :]                               # (L, B, H)

    # Pre-transpose weight to (K, N) and pad the label dim to a lane-dense
    # multiple of 128 so the kernel's output stores are unmasked.
    n_pad = max(128, pl.cdiv(n_labels, 128) * 128)
    w_t = jnp.zeros((K, n_pad), w.dtype).at[:, :n_labels].set(w.T)
    b_pad = jnp.zeros((1, n_pad), b.dtype).at[0, :n_labels].set(b)

    logits_pad, encoder_out = pl.pallas_call(
        cls_concat_linear_kernel,
        out_shape=(
            jax.ShapeDtypeStruct((B, n_pad), jnp.float32),
            jax.ShapeDtypeStruct((B, K), jnp.float32),
        ),
        grid=(1,),
        in_specs=[
            pl.BlockSpec((L, B, H), lambda i: (0, 0, 0)),
            pl.BlockSpec((K, n_pad), lambda i: (0, 0)),
            pl.BlockSpec((1, n_pad), lambda i: (0, 0)),
        ],
        out_specs=(
            pl.BlockSpec((B, n_pad), lambda i: (0, 0)),
            pl.BlockSpec((B, K), lambda i: (0, 0)),
        ),
        compiler_params=pltpu.CompilerParams(
            dimension_semantics=("arbitrary",)),
    )(cls, w_t, b_pad)

    logits = logits_pad[:, :n_labels]
    return logits, encoder_out


if __name__ == "__main__":
    # Small shapes consistent with the module: hidden size 768 is hardcoded
    # (feature_layers * 768 input to fcl1); keep everything else tiny.
    B, S, H = 2, 8, 768
    feature_layers = 2
    n_labels = 4

    key = jax.random.PRNGKey(0)
    k_hid, k_w, k_b = jax.random.split(key, 3)

    # Synthesized encoder hidden states, ordered [outs[-1], outs[-2], ...] to
    # match the torch.cat order in the module.
    hidden_states = jax.random.normal(
        k_hid, (feature_layers, B, S, H), jnp.float32)

    # Deterministic fcl1 parameters (nn.Linear(feature_layers*768, n_labels)).
    w = jax.random.normal(k_w, (n_labels, feature_layers * H), jnp.float32) * 0.02
    b = jax.random.normal(k_b, (n_labels,), jnp.float32) * 0.02

    logits, encoder_out = classification_forward(hidden_states, w, b)
    logits = jax.block_until_ready(logits)
    encoder_out = jax.block_until_ready(encoder_out)

    # Pure-JAX reference of the same math.
    enc_ref = jnp.concatenate(
        [hidden_states[i, :, 0, :] for i in range(feature_layers)], axis=-1)
    logits_ref = enc_ref @ w.T + b

    assert logits.shape == (B, n_labels)
    assert encoder_out.shape == (B, feature_layers * H)
    assert np.allclose(np.asarray(encoder_out), np.asarray(enc_ref), atol=1e-5)
    assert np.allclose(np.asarray(logits), np.asarray(logits_ref), atol=1e-3)

    print("KERNEL_OK")
</pallas_src>

<mosaic_0001>
module attributes {stable_mosaic.version = 11 : i64} {
  func.func @cls_concat_linear_kernel(%arg0: i32, %arg1: memref<2x2x768xf32, #tpu.memory_space<vmem>>, %arg2: memref<1536x128xf32, #tpu.memory_space<vmem>>, %arg3: memref<1x128xf32, #tpu.memory_space<vmem>>, %arg4: memref<2x128xf32, #tpu.memory_space<vmem>>, %arg5: memref<2x1536xf32, #tpu.memory_space<vmem>>) attributes {dimension_semantics = [#tpu.dimension_semantics<arbitrary>], iteration_bounds = array<i64: 1>, scalar_prefetch = 0 : i64, scratch_operands = 0 : i64, tpu.core_type = #tpu.core_type<tc>, window_params = [{pipeline_mode = #tpu.pipeline_mode<synchronous>, transform_indices = @transform_0, window_bounds = array<i64: 2, 2, 768>}, {pipeline_mode = #tpu.pipeline_mode<synchronous>, transform_indices = @transform_1, window_bounds = array<i64: 1536, 128>}, {pipeline_mode = #tpu.pipeline_mode<synchronous>, transform_indices = @transform_2, window_bounds = array<i64: 1, 128>}, {pipeline_mode = #tpu.pipeline_mode<synchronous>, transform_indices = @transform_3, window_bounds = array<i64: 2, 128>}, {pipeline_mode = #tpu.pipeline_mode<synchronous>, transform_indices = @transform_4, window_bounds = array<i64: 2, 1536>}]} {
    %c0 = arith.constant 0 : index
    %c0_0 = arith.constant 0 : index
    %c0_1 = arith.constant 0 : index
    %0 = vector.load %arg1[%c0, %c0_0, %c0_1] : memref<2x2x768xf32, #tpu.memory_space<vmem>>, vector<1x2x768xf32>
    %1 = vector.shape_cast %0 : vector<1x2x768xf32> to vector<2x768xf32>
    %c1 = arith.constant 1 : index
    %c0_2 = arith.constant 0 : index
    %c0_3 = arith.constant 0 : index
    %2 = vector.load %arg1[%c1, %c0_2, %c0_3] : memref<2x2x768xf32, #tpu.memory_space<vmem>>, vector<1x2x768xf32>
    %3 = vector.shape_cast %2 : vector<1x2x768xf32> to vector<2x768xf32>
    %4 = tpu.concatenate %1, %3 in 1 : vector<2x768xf32>, vector<2x768xf32> -> vector<2x1536xf32>
    %c0_4 = arith.constant 0 : index
    %c0_5 = arith.constant 0 : index
    %5 = vector.load %arg5[%c0_4, %c0_5] : memref<2x1536xf32, #tpu.memory_space<vmem>>, vector<2x1536xf32>
    tpu.vector_store %arg5[%c0_4, %c0_5], %4 {strides = array<i32>} : memref<2x1536xf32, #tpu.memory_space<vmem>>, vector<2x1536xf32>,
    %c0_6 = arith.constant 0 : index
    %c0_7 = arith.constant 0 : index
    %6 = vector.load %arg2[%c0_6, %c0_7] : memref<1536x128xf32, #tpu.memory_space<vmem>>, vector<1536x128xf32>
    %cst = arith.constant dense<0.000000e+00> : vector<2x128xf32>
    %7 = tpu.matmul %4, %6, %cst {dimension_numbers = #tpu.dot_dimension_numbers<[1], [0], [0], [1], [0, 0, 1, 1], [], []>} : vector<2x1536xf32>, vector<1536x128xf32>, vector<2x128xf32> -> vector<2x128xf32>
    %c0_8 = arith.constant 0 : index
    %c0_9 = arith.constant 0 : index
    %8 = vector.load %arg3[%c0_8, %c0_9] : memref<1x128xf32, #tpu.memory_space<vmem>>, vector<1x128xf32>
    %9 = vector.broadcast %8 : vector<1x128xf32> to vector<2x128xf32>
    %10 = arith.addf %7, %9 : vector<2x128xf32>
    %c0_10 = arith.constant 0 : index
    %c0_11 = arith.constant 0 : index
    %11 = vector.load %arg4[%c0_10, %c0_11] : memref<2x128xf32, #tpu.memory_space<vmem>>, vector<2x128xf32>
    tpu.vector_store %arg4[%c0_10, %c0_11], %10 {strides = array<i32>} : memref<2x128xf32, #tpu.memory_space<vmem>>, vector<2x128xf32>,
    return
  }
  func.func @transform_0(%arg0: i32) -> (i32, i32, i32) {
    %c0_i32 = arith.constant 0 : i32
    %c0_i32_0 = arith.constant 0 : i32
    %c0_i32_1 = arith.constant 0 : i32
    %c0_i32_2 = arith.constant 0 : i32
    return %c0_i32, %c0_i32_0, %c0_i32_1 : i32, i32, i32
  }
  func.func @transform_1(%arg0: i32) -> (i32, i32) {
    %c0_i32 = arith.constant 0 : i32
    %c0_i32_0 = arith.constant 0 : i32
    %c0_i32_1 = arith.constant 0 : i32
    return %c0_i32, %c0_i32_0 : i32, i32
  }
  func.func @transform_2(%arg0: i32) -> (i32, i32) {
    %c0_i32 = arith.constant 0 : i32
    %c0_i32_0 = arith.constant 0 : i32
    %c0_i32_1 = arith.constant 0 : i32
    return %c0_i32, %c0_i32_0 : i32, i32
  }
  func.func @transform_3(%arg0: i32) -> (i32, i32) {
    %c0_i32 = arith.constant 0 : i32
    %c0_i32_0 = arith.constant 0 : i32
    %c0_i32_1 = arith.constant 0 : i32
    return %c0_i32, %c0_i32_0 : i32, i32
  }
  func.func @transform_4(%arg0: i32) -> (i32, i32) {
    %c0_i32 = arith.constant 0 : i32
    %c0_i32_0 = arith.constant 0 : i32
    %c0_i32_1 = arith.constant 0 : i32
    return %c0_i32, %c0_i32_0 : i32, i32
  }
}

</mosaic_0001>

<llo_original>
// kernel: tpu_custom_call.1
$region0: #{tpu_custom_call.1}
  #allocation0 [shape = 'u32[]', space=smem, size = 0x4, offset = 0x4, fixed_abs, tag = 'smem constant byte address 0x4 - core index']
  #allocation1 [shape = 'u32[144,128]{1,0:T(1,128)}', space=vmem, size = 0x12000, scoped, tag = 'internal scratch']
  %s0 = inlined_call_operand.hbm [shape: f32[2,2,768], index: 0, kind: input, shape index: {}]
  %s1 = inlined_call_operand.hbm [shape: f32[1536,128], index: 1, kind: input, shape index: {}]
  %s2 = inlined_call_operand.vmem [shape: f32[1,128], index: 2, kind: input, shape index: {}]
  %s3 = inlined_call_operand.hbm [shape: f32[2,128], index: 3, kind: output, shape index: {0}]
  %s4 = inlined_call_operand.hbm [shape: f32[2,1536], index: 4, kind: output, shape index: {1}]
  %5 = xla_tuple %s3, %s4
  %s6 = sld [smem:[#allocation0]]
  $region38: #{tpu_custom_call.1} parent=0
    _
  %s8 = ssub.s32 1, %s6
  %s9 = scalar_select 0, %s8, %s6
  $region1: #{tpu_custom_call.1} parent=0
    #allocation2 [shape = 'u8[12288]{0}', space=vmem, size = 0x3000, scoped, tag = 'input window, operand 0, single buffered']
    #allocation3 [shape = 's32[1]{0}', space=sflag, size = 0x4, scoped, tag = 'scoped memory for tpu_custom_call.1']
    #allocation4 [shape = 's32[1]{0}', space=sflag, size = 0x4, scoped, tag = 'scoped memory for tpu_custom_call.1']
    #allocation5 [shape = 'u8[786432]{0}', space=vmem, size = 0xc0000, scoped, tag = 'input window, operand 1, single buffered']
    #allocation6 [shape = 's32[1]{0}', space=sflag, size = 0x4, scoped, tag = 'scoped memory for tpu_custom_call.1']
    #allocation7 [shape = 'u8[1024]{0}', space=vmem, size = 0x400, scoped, tag = 'output window, operand 0, single buffered']
    #allocation8 [shape = 'u8[12288]{0}', space=vmem, size = 0x3000, scoped, tag = 'output window, operand 1, single buffered']
    #allocation9 [shape = 's32[1]{0}', space=sflag, size = 0x4, scoped, tag = 'scoped memory for tpu_custom_call.1']
    %10 = vsyncpa [#allocation3], 0
    %11 = vsyncpa [#allocation6], 0
    %12 = vsyncpa [#allocation4], 0
    %13 = vsyncpa [#allocation9], 0
    // Predicated region
    $region2: #{tpu_custom_call.1} parent=1 // pred_check
      _
    $region3: #{tpu_custom_call.1} parent=1 // pred_check_branch
      %15 = sbr.rel (0) target = $region5
    $region4: #{tpu_custom_call.1} parent=1 // pred_region
      %s17 = ssub.s32 384, 384
      %18 = vsyncadd [#allocation3], %s17
      %s19 = sshll.u32 [#allocation2], 4
      %s20 = int_to_ptr.vmem [resolvable:$true] %s19
      %25 = dma.hbm_to_vmem [thread:$0]  %s0, 384, %s20, [#allocation3], 192, 192, 12
    $region5: #{tpu_custom_call.1} parent=1 // pred_fallthru
      _
    // Predicated region
    $region6: #{tpu_custom_call.1} parent=1 // pred_check
      _
    $region7: #{tpu_custom_call.1} parent=1 // pred_check_branch
      %27 = sbr.rel (0) target = $region9
    $region8: #{tpu_custom_call.1} parent=1 // pred_region
      %s29 = ssub.s32 24576, 24576
      %30 = vsyncadd [#allocation6], %s29
      %s31 = sshll.u32 [#allocation5], 4
      %s32 = int_to_ptr.vmem [resolvable:$true] %s31
      %37 = dma.hbm_to_vmem [thread:$0]  %s1, 24576, %s32, [#allocation6], 128, 128, 8
    $region9: #{tpu_custom_call.1} parent=1 // pred_fallthru
      _
    // Predicated region
    $region10: #{tpu_custom_call.1} parent=1 // pred_check
      _
    $region11: #{tpu_custom_call.1} parent=1 // pred_check_branch
      %39 = sbr.rel (0) target = $region13
    $region12: #{tpu_custom_call.1} parent=1 // pred_region
      _
    $region13: #{tpu_custom_call.1} parent=1 // pred_fallthru
      _
    // Predicated region
    $region14: #{tpu_custom_call.1} parent=1 // pred_check
      _
    $region15: #{tpu_custom_call.1} parent=1 // pred_check_branch
      %41 = sbr.rel (0) target = $region17
    $region16: #{tpu_custom_call.1} parent=1 // pred_region
      %42 = dma.done [#allocation3], 384
    $region17: #{tpu_custom_call.1} parent=1 // pred_fallthru
      _
    // Predicated region
    $region18: #{tpu_custom_call.1} parent=1 // pred_check
      _
    $region19: #{tpu_custom_call.1} parent=1 // pred_check_branch
      %44 = sbr.rel (0) target = $region21
    $region20: #{tpu_custom_call.1} parent=1 // pred_region
      %45 = dma.done [#allocation6], 24576
    $region21: #{tpu_custom_call.1} parent=1 // pred_fallthru
      _
    %v46 = vld [vmem:[#allocation2] sm:$0xff]
    %v47 = vld [vmem:[#allocation2 + $0x8] sm:$0xf]
    %s48 = scalar_lea.vmem [#allocation2], 12
    %v49 = vld [vmem:[%s48] sm:$0xff]
    %v50 = vld [vmem:[%s48 + $0x8] sm:$0xf]
    %v53 = vcombine.high %v46, %v46
    %v55 = vunpack.c.l.s4 1983009808
    %v56 = vunpack.c.0.s8 %v55
    %v57 = vlaneseq
    %v58 = vshrl.u32 %v57, 7
    %v59 = vsub.s32 %v56, %v58
    %v60 = vrot.slane %v46, %v59
    %v62 = vunpack.c.l.s4 1983009808
    %v63 = vunpack.c.0.s8 %v62
    %v64 = vlaneseq
    %v65 = vshrl.u32 %v64, 7
    %v66 = vsub.s32 %v63, %v65
    %v67 = vrot.slane %v53, %v66
    %v68 = vcombine.high %v60, %v60
    %v69 = vcombine.high %v67, %v67
    %v71 = vunpack.c.l.s4 1983009808
    %v72 = vunpack.c.0.s8 %v71
    %v73 = vlaneseq
    %v74 = vshrl.u32 %v73, 7
    %v75 = vsub.s32 %v72, %v74
    %v76 = vrot.slane %v47, %v75
    %v77 = vcombine.high %v76, %v76
    %v86 = vcombine.high %v49, %v49
    %v88 = vunpack.c.l.s4 1983009808
    %v89 = vunpack.c.0.s8 %v88
    %v90 = vlaneseq
    %v91 = vshrl.u32 %v90, 7
    %v92 = vsub.s32 %v89, %v91
    %v93 = vrot.slane %v49, %v92
    %v95 = vunpack.c.l.s4 1983009808
    %v96 = vunpack.c.0.s8 %v95
    %v97 = vlaneseq
    %v98 = vshrl.u32 %v97, 7
    %v99 = vsub.s32 %v96, %v98
    %v100 = vrot.slane %v86, %v99
    %v101 = vcombine.high %v93, %v93
    %v102 = vcombine.high %v100, %v100
    %v104 = vunpack.c.l.s4 1983009808
    %v105 = vunpack.c.0.s8 %v104
    %v106 = vlaneseq
    %v107 = vshrl.u32 %v106, 7
    %v108 = vsub.s32 %v105, %v107
    %v109 = vrot.slane %v50, %v108
    %v110 = vcombine.high %v109, %v109
    %v117 = vcombine.low %v60, %v68
    %v118 = vcombine.low %v67, %v69
    %v120 = vunpack.c.l.s4 1983009808
    %v121 = vunpack.c.0.s8 %v120
    %v122 = vlaneseq
    %v123 = vshrl.u32 %v122, 7
    %v124 = vsub.s32 %v121, %v123
    %v125 = vrot.slane %v117, %v124
    %v127 = vunpack.c.l.s4 1983009808
    %v128 = vunpack.c.0.s8 %v127
    %v129 = vlaneseq
    %v130 = vshrl.u32 %v129, 7
    %v131 = vsub.s32 %v128, %v130
    %v132 = vrot.slane %v118, %v131
    %v133 = vcombine.low %v125, %v132
    %v134 = vcombine.low %v76, %v77
    %v135 = vcombine.low %v93, %v101
    %v137 = vunpack.c.l.s4 1983009808
    %v138 = vunpack.c.0.s8 %v137
    %v139 = vlaneseq
    %v140 = vshrl.u32 %v139, 7
    %v141 = vsub.s32 %v138, %v140
    %v142 = vrot.slane %v134, %v141
    %v144 = vunpack.c.l.s4 1983009808
    %v145 = vunpack.c.0.s8 %v144
    %v146 = vlaneseq
    %v147 = vshrl.u32 %v146, 7
    %v148 = vsub.s32 %v145, %v147
    %v149 = vrot.slane %v135, %v148
    %v150 = vcombine.low %v142, %v149
    %v151 = vcombine.low %v100, %v102
    %v152 = vcombine.low %v109, %v110
    %v154 = vunpack.c.l.s4 1983009808
    %v155 = vunpack.c.0.s8 %v154
    %v156 = vlaneseq
    %v157 = vshrl.u32 %v156, 7
    %v158 = vsub.s32 %v155, %v157
    %v159 = vrot.slane %v151, %v158
    %v161 = vunpack.c.l.s4 1983009808
    %v162 = vunpack.c.0.s8 %v161
    %v163 = vlaneseq
    %v164 = vshrl.u32 %v163, 7
    %v165 = vsub.s32 %v162, %v164
    %v166 = vrot.slane %v152, %v165
    %v167 = vcombine.low %v159, %v166
    %171 = vst [vmem:[#allocation8] sm:$0xff] %v133
    %172 = vst [vmem:[#allocation8 + $0x8] sm:$0xff] %v150
    %173 = vst [vmem:[#allocation8 + $0x10] sm:$0xff] %v167
    %v174 = vld [vmem:[#allocation5] sm:$0xff]
    %v175 = vld [vmem:[#allocation5 + $0x8] sm:$0xff]
    %v176 = vld [vmem:[#allocation5 + $0x10] sm:$0xff]
    %v177 = vld [vmem:[#allocation5 + $0x18] sm:$0xff]
    %v178 = vld [vmem:[#allocation5 + $0x20] sm:$0xff]
    %v179 = vld [vmem:[#allocation5 + $0x28] sm:$0xff]
    %v180 = vld [vmem:[#allocation5 + $0x30] sm:$0xff]
    %v181 = vld [vmem:[#allocation5 + $0x38] sm:$0xff]
    %v182 = vld [vmem:[#allocation5 + $0x40] sm:$0xff]
    %v183 = vld [vmem:[#allocation5 + $0x48] sm:$0xff]
    %v184 = vld [vmem:[#allocation5 + $0x50] sm:$0xff]
    %v185 = vld [vmem:[#allocation5 + $0x58] sm:$0xff]
    %v186 = vld [vmem:[#allocation5 + $0x60] sm:$0xff]
    %v187 = vld [vmem:[#allocation5 + $0x68] sm:$0xff]
    %v188 = vld [vmem:[#allocation5 + $0x70] sm:$0xff]
    %v189 = vld [vmem:[#allocation5 + $0x78] sm:$0xff]
    %v190 = vld [vmem:[#allocation5 + $0x80] sm:$0xff]
    %v191 = vld [vmem:[#allocation5 + $0x88] sm:$0xff]
    %v192 = vld [vmem:[#allocation5 + $0x90] sm:$0xff]
    %v193 = vld [vmem:[#allocation5 + $0x98] sm:$0xff]
    %v194 = vld [vmem:[#allocation5 + $0xa0] sm:$0xff]
    %v195 = vld [vmem:[#allocation5 + $0xa8] sm:$0xff]
    %v196 = vld [vmem:[#allocation5 + $0xb0] sm:$0xff]
    %v197 = vld [vmem:[#allocation5 + $0xb8] sm:$0xff]
    %v198 = vld [vmem:[#allocation5 + $0xc0] sm:$0xff]
    %v199 = vld [vmem:[#allocation5 + $0xc8] sm:$0xff]
    %v200 = vld [vmem:[#allocation5 + $0xd0] sm:$0xff]
    %v201 = vld [vmem:[#allocation5 + $0xd8] sm:$0xff]
    %v202 = vld [vmem:[#allocation5 + $0xe0] sm:$0xff]
    %v203 = vld [vmem:[#allocation5 + $0xe8] sm:$0xff]
    %v204 = vld [vmem:[#allocation5 + $0xf0] sm:$0xff]
    %v205 = vld [vmem:[#allocation5 + $0xf8] sm:$0xff]
    %v206 = vld [vmem:[#allocation5 + $0x100] sm:$0xff]
    %v207 = vld [vmem:[#allocation5 + $0x108] sm:$0xff]
    %v208 = vld [vmem:[#allocation5 + $0x110] sm:$0xff]
    %v209 = vld [vmem:[#allocation5 + $0x118] sm:$0xff]
    %v210 = vld [vmem:[#allocation5 + $0x120] sm:$0xff]
    %v211 = vld [vmem:[#allocation5 + $0x128] sm:$0xff]
    %v212 = vld [vmem:[#allocation5 + $0x130] sm:$0xff]
    %v213 = vld [vmem:[#allocation5 + $0x138] sm:$0xff]
    %v214 = vld [vmem:[#allocation5 + $0x140] sm:$0xff]
    %v215 = vld [vmem:[#allocation5 + $0x148] sm:$0xff]
    %v216 = vld [vmem:[#allocation5 + $0x150] sm:$0xff]
    %v217 = vld [vmem:[#allocation5 + $0x158] sm:$0xff]
    %v218 = vld [vmem:[#allocation5 + $0x160] sm:$0xff]
    %v219 = vld [vmem:[#allocation5 + $0x168] sm:$0xff]
    %v220 = vld [vmem:[#allocation5 + $0x170] sm:$0xff]
    %v221 = vld [vmem:[#allocation5 + $0x178] sm:$0xff]
    %v222 = vld [vmem:[#allocation5 + $0x180] sm:$0xff]
    %v223 = vld [vmem:[#allocation5 + $0x188] sm:$0xff]
    %v224 = vld [vmem:[#allocation5 + $0x190] sm:$0xff]
    %v225 = vld [vmem:[#allocation5 + $0x198] sm:$0xff]
    %v226 = vld [vmem:[#allocation5 + $0x1a0] sm:$0xff]
    %v227 = vld [vmem:[#allocation5 + $0x1a8] sm:$0xff]
    %v228 = vld [vmem:[#allocation5 + $0x1b0] sm:$0xff]
    %v229 = vld [vmem:[#allocation5 + $0x1b8] sm:$0xff]
    %v230 = vld [vmem:[#allocation5 + $0x1c0] sm:$0xff]
    %v231 = vld [vmem:[#allocation5 + $0x1c8] sm:$0xff]
    %v232 = vld [vmem:[#allocation5 + $0x1d0] sm:$0xff]
    %v233 = vld [vmem:[#allocation5 + $0x1d8] sm:$0xff]
    %v234 = vld [vmem:[#allocation5 + $0x1e0] sm:$0xff]
    %v235 = vld [vmem:[#allocation5 + $0x1e8] sm:$0xff]
    %v236 = vld [vmem:[#allocation5 + $0x1f0] sm:$0xff]
    %v237 = vld [vmem:[#allocation5 + $0x1f8] sm:$0xff]
    %v238 = vld [vmem:[#allocation5 + $0x200] sm:$0xff]
    %v239 = vld [vmem:[#allocation5 + $0x208] sm:$0xff]
    %v240 = vld [vmem:[#allocation5 + $0x210] sm:$0xff]
    %v241 = vld [vmem:[#allocation5 + $0x218] sm:$0xff]
    %v242 = vld [vmem:[#allocation5 + $0x220] sm:$0xff]
    %v243 = vld [vmem:[#allocation5 + $0x228] sm:$0xff]
    %v244 = vld [vmem:[#allocation5 + $0x230] sm:$0xff]
    %v245 = vld [vmem:[#allocation5 + $0x238] sm:$0xff]
    %v246 = vld [vmem:[#allocation5 + $0x240] sm:$0xff]
    %v247 = vld [vmem:[#allocation5 + $0x248] sm:$0xff]
    %v248 = vld [vmem:[#allocation5 + $0x250] sm:$0xff]
    %v249 = vld [vmem:[#allocation5 + $0x258] sm:$0xff]
    %v250 = vld [vmem:[#allocation5 + $0x260] sm:$0xff]
    %v251 = vld [vmem:[#allocation5 + $0x268] sm:$0xff]
    %v252 = vld [vmem:[#allocation5 + $0x270] sm:$0xff]
    %v253 = vld [vmem:[#allocation5 + $0x278] sm:$0xff]
    %v254 = vld [vmem:[#allocation5 + $0x280] sm:$0xff]
    %v255 = vld [vmem:[#allocation5 + $0x288] sm:$0xff]
    %v256 = vld [vmem:[#allocation5 + $0x290] sm:$0xff]
    %v257 = vld [vmem:[#allocation5 + $0x298] sm:$0xff]
    %v258 = vld [vmem:[#allocation5 + $0x2a0] sm:$0xff]
    %v259 = vld [vmem:[#allocation5 + $0x2a8] sm:$0xff]
    %v260 = vld [vmem:[#allocation5 + $0x2b0] sm:$0xff]
    %v261 = vld [vmem:[#allocation5 + $0x2b8] sm:$0xff]
    %v262 = vld [vmem:[#allocation5 + $0x2c0] sm:$0xff]
    %v263 = vld [vmem:[#allocation5 + $0x2c8] sm:$0xff]
    %v264 = vld [vmem:[#allocation5 + $0x2d0] sm:$0xff]
    %v265 = vld [vmem:[#allocation5 + $0x2d8] sm:$0xff]
    %v266 = vld [vmem:[#allocation5 + $0x2e0] sm:$0xff]
    %v267 = vld [vmem:[#allocation5 + $0x2e8] sm:$0xff]
    %v268 = vld [vmem:[#allocation5 + $0x2f0] sm:$0xff]
    %v269 = vld [vmem:[#allocation5 + $0x2f8] sm:$0xff]
    %v270 = vld [vmem:[#allocation5 + $0x300] sm:$0xff]
    %v271 = vld [vmem:[#allocation5 + $0x308] sm:$0xff]
    %v272 = vld [vmem:[#allocation5 + $0x310] sm:$0xff]
    %v273 = vld [vmem:[#allocation5 + $0x318] sm:$0xff]
    %v274 = vld [vmem:[#allocation5 + $0x320] sm:$0xff]
    %v275 = vld [vmem:[#allocation5 + $0x328] sm:$0xff]
    %v276 = vld [vmem:[#allocation5 + $0x330] sm:$0xff]
    %v277 = vld [vmem:[#allocation5 + $0x338] sm:$0xff]
    %v278 = vld [vmem:[#allocation5 + $0x340] sm:$0xff]
    %v279 = vld [vmem:[#allocation5 + $0x348] sm:$0xff]
    %v280 = vld [vmem:[#allocation5 + $0x350] sm:$0xff]
    %v281 = vld [vmem:[#allocation5 + $0x358] sm:$0xff]
    %v282 = vld [vmem:[#allocation5 + $0x360] sm:$0xff]
    %v283 = vld [vmem:[#allocation5 + $0x368] sm:$0xff]
    %v284 = vld [vmem:[#allocation5 + $0x370] sm:$0xff]
    %v285 = vld [vmem:[#allocation5 + $0x378] sm:$0xff]
    %v286 = vld [vmem:[#allocation5 + $0x380] sm:$0xff]
    %v287 = vld [vmem:[#allocation5 + $0x388] sm:$0xff]
    %v288 = vld [vmem:[#allocation5 + $0x390] sm:$0xff]
    %v289 = vld [vmem:[#allocation5 + $0x398] sm:$0xff]
    %v290 = vld [vmem:[#allocation5 + $0x3a0] sm:$0xff]
    %v291 = vld [vmem:[#allocation5 + $0x3a8] sm:$0xff]
    %v292 = vld [vmem:[#allocation5 + $0x3b0] sm:$0xff]
    %v293 = vld [vmem:[#allocation5 + $0x3b8] sm:$0xff]
    %v294 = vld [vmem:[#allocation5 + $0x3c0] sm:$0xff]
    %v295 = vld [vmem:[#allocation5 + $0x3c8] sm:$0xff]
    %v296 = vld [vmem:[#allocation5 + $0x3d0] sm:$0xff]
    %v297 = vld [vmem:[#allocation5 + $0x3d8] sm:$0xff]
    %v298 = vld [vmem:[#allocation5 + $0x3e0] sm:$0xff]
    %v299 = vld [vmem:[#allocation5 + $0x3e8] sm:$0xff]
    %v300 = vld [vmem:[#allocation5 + $0x3f0] sm:$0xff]
    %v301 = vld [vmem:[#allocation5 + $0x3f8] sm:$0xff]
    %v302 = vld [vmem:[#allocation5 + $0x400] sm:$0xff]
    %v303 = vld [vmem:[#allocation5 + $0x408] sm:$0xff]
    %v304 = vld [vmem:[#allocation5 + $0x410] sm:$0xff]
    %v305 = vld [vmem:[#allocation5 + $0x418] sm:$0xff]
    %v306 = vld [vmem:[#allocation5 + $0x420] sm:$0xff]
    %v307 = vld [vmem:[#allocation5 + $0x428] sm:$0xff]
    %v308 = vld [vmem:[#allocation5 + $0x430] sm:$0xff]
    %v309 = vld [vmem:[#allocation5 + $0x438] sm:$0xff]
    %v310 = vld [vmem:[#allocation5 + $0x440] sm:$0xff]
    %v311 = vld [vmem:[#allocation5 + $0x448] sm:$0xff]
    %v312 = vld [vmem:[#allocation5 + $0x450] sm:$0xff]
    %v313 = vld [vmem:[#allocation5 + $0x458] sm:$0xff]
    %v314 = vld [vmem:[#allocation5 + $0x460] sm:$0xff]
    %v315 = vld [vmem:[#allocation5 + $0x468] sm:$0xff]
    %v316 = vld [vmem:[#allocation5 + $0x470] sm:$0xff]
    %v317 = vld [vmem:[#allocation5 + $0x478] sm:$0xff]
    %v318 = vld [vmem:[#allocation5 + $0x480] sm:$0xff]
    %v319 = vld [vmem:[#allocation5 + $0x488] sm:$0xff]
    %v320 = vld [vmem:[#allocation5 + $0x490] sm:$0xff]
    %v321 = vld [vmem:[#allocation5 + $0x498] sm:$0xff]
    %v322 = vld [vmem:[#allocation5 + $0x4a0] sm:$0xff]
    %v323 = vld [vmem:[#allocation5 + $0x4a8] sm:$0xff]
    %v324 = vld [vmem:[#allocation5 + $0x4b0] sm:$0xff]
    %v325 = vld [vmem:[#allocation5 + $0x4b8] sm:$0xff]
    %v326 = vld [vmem:[#allocation5 + $0x4c0] sm:$0xff]
    %v327 = vld [vmem:[#allocation5 + $0x4c8] sm:$0xff]
    %v328 = vld [vmem:[#allocation5 + $0x4d0] sm:$0xff]
    %v329 = vld [vmem:[#allocation5 + $0x4d8] sm:$0xff]
    %v330 = vld [vmem:[#allocation5 + $0x4e0] sm:$0xff]
    %v331 = vld [vmem:[#allocation5 + $0x4e8] sm:$0xff]
    %v332 = vld [vmem:[#allocation5 + $0x4f0] sm:$0xff]
    %v333 = vld [vmem:[#allocation5 + $0x4f8] sm:$0xff]
    %v334 = vld [vmem:[#allocation5 + $0x500] sm:$0xff]
    %v335 = vld [vmem:[#allocation5 + $0x508] sm:$0xff]
    %v336 = vld [vmem:[#allocation5 + $0x510] sm:$0xff]
    %v337 = vld [vmem:[#allocation5 + $0x518] sm:$0xff]
    %v338 = vld [vmem:[#allocation5 + $0x520] sm:$0xff]
    %v339 = vld [vmem:[#allocation5 + $0x528] sm:$0xff]
    %v340 = vld [vmem:[#allocation5 + $0x530] sm:$0xff]
    %v341 = vld [vmem:[#allocation5 + $0x538] sm:$0xff]
    %v342 = vld [vmem:[#allocation5 + $0x540] sm:$0xff]
    %v343 = vld [vmem:[#allocation5 + $0x548] sm:$0xff]
    %v344 = vld [vmem:[#allocation5 + $0x550] sm:$0xff]
    %v345 = vld [vmem:[#allocation5 + $0x558] sm:$0xff]
    %v346 = vld [vmem:[#allocation5 + $0x560] sm:$0xff]
    %v347 = vld [vmem:[#allocation5 + $0x568] sm:$0xff]
    %v348 = vld [vmem:[#allocation5 + $0x570] sm:$0xff]
    %v349 = vld [vmem:[#allocation5 + $0x578] sm:$0xff]
    %v350 = vld [vmem:[#allocation5 + $0x580] sm:$0xff]
    %v351 = vld [vmem:[#allocation5 + $0x588] sm:$0xff]
    %v352 = vld [vmem:[#allocation5 + $0x590] sm:$0xff]
    %v353 = vld [vmem:[#allocation5 + $0x598] sm:$0xff]
    %v354 = vld [vmem:[#allocation5 + $0x5a0] sm:$0xff]
    %v355 = vld [vmem:[#allocation5 + $0x5a8] sm:$0xff]
    %v356 = vld [vmem:[#allocation5 + $0x5b0] sm:$0xff]
    %v357 = vld [vmem:[#allocation5 + $0x5b8] sm:$0xff]
    %v358 = vld [vmem:[#allocation5 + $0x5c0] sm:$0xff]
    %v359 = vld [vmem:[#allocation5 + $0x5c8] sm:$0xff]
    %v360 = vld [vmem:[#allocation5 + $0x5d0] sm:$0xff]
    %v361 = vld [vmem:[#allocation5 + $0x5d8] sm:$0xff]
    %v362 = vld [vmem:[#allocation5 + $0x5e0] sm:$0xff]
    %v363 = vld [vmem:[#allocation5 + $0x5e8] sm:$0xff]
    %v364 = vld [vmem:[#allocation5 + $0x5f0] sm:$0xff]
    %v365 = vld [vmem:[#allocation5 + $0x5f8] sm:$0xff]
    %v366 = vld [vmem:[%s2] sm:$0x1]
    %v368 = vlaneseq
    %v369 = vshrl.u32 %v368, 7
    %v370 = vsub.s32 0, %v369
    %v371 = vrot.slane %v366, %v370
    %373 = vmatprep.subr.mxu0 0.0
    %374 = vmatpush1.msra.mxu0 %v174
    %375 = vmatprep.subr.mxu0 0.0
    %376 = vmatpush1.msra.mxu0 %v175
    %377 = vmatprep.subr.mxu0 0.0
    %378 = vmatpush1.msra.mxu0 %v176
    %379 = vmatprep.subr.mxu0 0.0
    %380 = vmatpush1.msra.mxu0 %v177
    %381 = vmatprep.subr.mxu0 0.0
    %382 = vmatpush1.msra.mxu0 %v178
    %383 = vmatprep.subr.mxu0 0.0
    %384 = vmatpush1.msra.mxu0 %v179
    %385 = vmatprep.subr.mxu0 0.0
    %386 = vmatpush1.msra.mxu0 %v180
    %387 = vmatprep.subr.mxu0 0.0
    %388 = vmatpush1.msra.mxu0 %v181
    %389 = vmatprep.subr.mxu0 0.0
    %390 = vmatpush1.msra.mxu0 %v182
    %391 = vmatprep.subr.mxu0 0.0
    %392 = vmatpush1.msra.mxu0 %v183
    %393 = vmatprep.subr.mxu0 0.0
    %394 = vmatpush1.msra.mxu0 %v184
    %395 = vmatprep.subr.mxu0 0.0
    %396 = vmatpush1.msra.mxu0 %v185
    %397 = vmatprep.subr.mxu0 0.0
    %398 = vmatpush1.msra.mxu0 %v186
    %399 = vmatprep.subr.mxu0 0.0
    %400 = vmatpush1.msra.mxu0 %v187
    %401 = vmatprep.subr.mxu0 0.0
    %402 = vmatpush1.msra.mxu0 %v188
    %403 = vmatprep.subr.mxu0 0.0
    %404 = vmatpush1.msra.mxu0 %v189
    %405 = vmatprep.subr.mxu0 0.0
    %406 = vmatpush1.msra.mxu0 %v190
    %407 = vmatprep.subr.mxu0 0.0
    %408 = vmatpush1.msra.mxu0 %v191
    %409 = vmatprep.subr.mxu0 0.0
    %410 = vmatpush1.msra.mxu0 %v192
    %411 = vmatprep.subr.mxu0 0.0
    %412 = vmatpush1.msra.mxu0 %v193
    %413 = vmatprep.subr.mxu0 0.0
    %414 = vmatpush1.msra.mxu0 %v194
    %415 = vmatprep.subr.mxu0 0.0
    %416 = vmatpush1.msra.mxu0 %v195
    %417 = vmatprep.subr.mxu0 0.0
    %418 = vmatpush1.msra.mxu0 %v196
    %419 = vmatprep.subr.mxu0 0.0
    %420 = vmatpush1.msra.mxu0 %v197
    %421 = vmatprep.subr.mxu0 0.0
    %422 = vmatpush1.msra.mxu0 %v198
    %423 = vmatprep.subr.mxu0 0.0
    %424 = vmatpush1.msra.mxu0 %v199
    %425 = vmatprep.subr.mxu0 0.0
    %426 = vmatpush1.msra.mxu0 %v200
    %427 = vmatprep.subr.mxu0 0.0
    %428 = vmatpush1.msra.mxu0 %v201
    %429 = vmatprep.subr.mxu0 0.0
    %430 = vmatpush1.msra.mxu0 %v202
    %431 = vmatprep.subr.mxu0 0.0
    %432 = vmatpush1.msra.mxu0 %v203
    %433 = vmatprep.subr.mxu0 0.0
    %434 = vmatpush1.msra.mxu0 %v204
    %435 = vmatprep.subr.mxu0 0.0
    %436 = vmatpush1.msra.mxu0 %v205
    %437 = vmatprep.mubr.f32.mxu0 %v68
    %438 = vmatmul.mubr.f32.gmra.mrb[0].mxu0 %v60
    %v439 = vpop.f32.mrb[0].mxu0
    %v440 = vadd.f32 %v371, %v439
    %v441 = vpop.f32.mrb[0].mxu0
    %442 = vdwg.mxu0
    %443 = vmatprep.subr.mxu0 0.0
    %444 = vmatpush1.msra.mxu0 %v206
    %445 = vmatprep.subr.mxu0 0.0
    %446 = vmatpush1.msra.mxu0 %v207
    %447 = vmatprep.subr.mxu0 0.0
    %448 = vmatpush1.msra.mxu0 %v208
    %449 = vmatprep.subr.mxu0 0.0
    %450 = vmatpush1.msra.mxu0 %v209
    %451 = vmatprep.subr.mxu0 0.0
    %452 = vmatpush1.msra.mxu0 %v210
    %453 = vmatprep.subr.mxu0 0.0
    %454 = vmatpush1.msra.mxu0 %v211
    %455 = vmatprep.subr.mxu0 0.0
    %456 = vmatpush1.msra.mxu0 %v212
    %457 = vmatprep.subr.mxu0 0.0
    %458 = vmatpush1.msra.mxu0 %v213
    %459 = vmatprep.subr.mxu0 0.0
    %460 = vmatpush1.msra.mxu0 %v214
    %461 = vmatprep.subr.mxu0 0.0
    %462 = vmatpush1.msra.mxu0 %v215
    %463 = vmatprep.subr.mxu0 0.0
    %464 = vmatpush1.msra.mxu0 %v216
    %465 = vmatprep.subr.mxu0 0.0
    %466 = vmatpush1.msra.mxu0 %v217
    %467 = vmatprep.subr.mxu0 0.0
    %468 = vmatpush1.msra.mxu0 %v218
    %469 = vmatprep.subr.mxu0 0.0
    %470 = vmatpush1.msra.mxu0 %v219
    %471 = vmatprep.subr.mxu0 0.0
    %472 = vmatpush1.msra.mxu0 %v220
    %473 = vmatprep.subr.mxu0 0.0
    %474 = vmatpush1.msra.mxu0 %v221
    %475 = vmatprep.subr.mxu0 0.0
    %476 = vmatpush1.msra.mxu0 %v222
    %477 = vmatprep.subr.mxu0 0.0
    %478 = vmatpush1.msra.mxu0 %v223
    %479 = vmatprep.subr.mxu0 0.0
    %480 = vmatpush1.msra.mxu0 %v224
    %481 = vmatprep.subr.mxu0 0.0
    %482 = vmatpush1.msra.mxu0 %v225
    %483 = vmatprep.subr.mxu0 0.0
    %484 = vmatpush1.msra.mxu0 %v226
    %485 = vmatprep.subr.mxu0 0.0
    %486 = vmatpush1.msra.mxu0 %v227
    %487 = vmatprep.subr.mxu0 0.0
    %488 = vmatpush1.msra.mxu0 %v228
    %489 = vmatprep.subr.mxu0 0.0
    %490 = vmatpush1.msra.mxu0 %v229
    %491 = vmatprep.subr.mxu0 0.0
    %492 = vmatpush1.msra.mxu0 %v230
    %493 = vmatprep.subr.mxu0 0.0
    %494 = vmatpush1.msra.mxu0 %v231
    %495 = vmatprep.subr.mxu0 0.0
    %496 = vmatpush1.msra.mxu0 %v232
    %497 = vmatprep.subr.mxu0 0.0
    %498 = vmatpush1.msra.mxu0 %v233
    %499 = vmatprep.subr.mxu0 0.0
    %500 = vmatpush1.msra.mxu0 %v234
    %501 = vmatprep.subr.mxu0 0.0
    %502 = vmatpush1.msra.mxu0 %v235
    %503 = vmatprep.subr.mxu0 0.0
    %504 = vmatpush1.msra.mxu0 %v236
    %505 = vmatprep.subr.mxu0 0.0
    %506 = vmatpush1.msra.mxu0 %v237
    %507 = vmatprep.mubr.f32.mxu0 %v69
    %508 = vmatmul.mubr.f32.gmra.mrb[0].mxu0 %v67
    %v509 = vpop.f32.mrb[0].mxu0
    %v510 = vadd.f32 %v440, %v509
    %v511 = vpop.f32.mrb[0].mxu0
    %512 = vdwg.mxu0
    %513 = vmatprep.subr.mxu0 0.0
    %514 = vmatpush1.msra.mxu0 %v238
    %515 = vmatprep.subr.mxu0 0.0
    %516 = vmatpush1.msra.mxu0 %v239
    %517 = vmatprep.subr.mxu0 0.0
    %518 = vmatpush1.msra.mxu0 %v240
    %519 = vmatprep.subr.mxu0 0.0
    %520 = vmatpush1.msra.mxu0 %v241
    %521 = vmatprep.subr.mxu0 0.0
    %522 = vmatpush1.msra.mxu0 %v242
    %523 = vmatprep.subr.mxu0 0.0
    %524 = vmatpush1.msra.mxu0 %v243
    %525 = vmatprep.subr.mxu0 0.0
    %526 = vmatpush1.msra.mxu0 %v244
    %527 = vmatprep.subr.mxu0 0.0
    %528 = vmatpush1.msra.mxu0 %v245
    %529 = vmatprep.subr.mxu0 0.0
    %530 = vmatpush1.msra.mxu0 %v246
    %531 = vmatprep.subr.mxu0 0.0
    %532 = vmatpush1.msra.mxu0 %v247
    %533 = vmatprep.subr.mxu0 0.0
    %534 = vmatpush1.msra.mxu0 %v248
    %535 = vmatprep.subr.mxu0 0.0
    %536 = vmatpush1.msra.mxu0 %v249
    %537 = vmatprep.subr.mxu0 0.0
    %538 = vmatpush1.msra.mxu0 %v250
    %539 = vmatprep.subr.mxu0 0.0
    %540 = vmatpush1.msra.mxu0 %v251
    %541 = vmatprep.subr.mxu0 0.0
    %542 = vmatpush1.msra.mxu0 %v252
    %543 = vmatprep.subr.mxu0 0.0
    %544 = vmatpush1.msra.mxu0 %v253
    %545 = vmatprep.subr.mxu0 0.0
    %546 = vmatpush1.msra.mxu0 %v254
    %547 = vmatprep.subr.mxu0 0.0
    %548 = vmatpush1.msra.mxu0 %v255
    %549 = vmatprep.subr.mxu0 0.0
    %550 = vmatpush1.msra.mxu0 %v256
    %551 = vmatprep.subr.mxu0 0.0
    %552 = vmatpush1.msra.mxu0 %v257
    %553 = vmatprep.subr.mxu0 0.0
    %554 = vmatpush1.msra.mxu0 %v258
    %555 = vmatprep.subr.mxu0 0.0
    %556 = vmatpush1.msra.mxu0 %v259
    %557 = vmatprep.subr.mxu0 0.0
    %558 = vmatpush1.msra.mxu0 %v260
    %559 = vmatprep.subr.mxu0 0.0
    %560 = vmatpush1.msra.mxu0 %v261
    %561 = vmatprep.subr.mxu0 0.0
    %562 = vmatpush1.msra.mxu0 %v262
    %563 = vmatprep.subr.mxu0 0.0
    %564 = vmatpush1.msra.mxu0 %v263
    %565 = vmatprep.subr.mxu0 0.0
    %566 = vmatpush1.msra.mxu0 %v264
    %567 = vmatprep.subr.mxu0 0.0
    %568 = vmatpush1.msra.mxu0 %v265
    %569 = vmatprep.subr.mxu0 0.0
    %570 = vmatpush1.msra.mxu0 %v266
    %571 = vmatprep.subr.mxu0 0.0
    %572 = vmatpush1.msra.mxu0 %v267
    %573 = vmatprep.subr.mxu0 0.0
    %574 = vmatpush1.msra.mxu0 %v268
    %575 = vmatprep.subr.mxu0 0.0
    %576 = vmatpush1.msra.mxu0 %v269
    %577 = vmatprep.mubr.f32.mxu0 %v77
    %578 = vmatmul.mubr.f32.gmra.mrb[0].mxu0 %v76
    %v579 = vpop.f32.mrb[0].mxu0
    %v580 = vadd.f32 %v510, %v579
    %v581 = vpop.f32.mrb[0].mxu0
    %582 = vdwg.mxu0
    %583 = vmatprep.subr.mxu0 0.0
    %584 = vmatpush1.msra.mxu0 %v270
    %585 = vmatprep.subr.mxu0 0.0
    %586 = vmatpush1.msra.mxu0 %v271
    %587 = vmatprep.subr.mxu0 0.0
    %588 = vmatpush1.msra.mxu0 %v272
    %589 = vmatprep.subr.mxu0 0.0
    %590 = vmatpush1.msra.mxu0 %v273
    %591 = vmatprep.subr.mxu0 0.0
    %592 = vmatpush1.msra.mxu0 %v274
    %593 = vmatprep.subr.mxu0 0.0
    %594 = vmatpush1.msra.mxu0 %v275
    %595 = vmatprep.subr.mxu0 0.0
    %596 = vmatpush1.msra.mxu0 %v276
    %597 = vmatprep.subr.mxu0 0.0
    %598 = vmatpush1.msra.mxu0 %v277
    %599 = vmatprep.subr.mxu0 0.0
    %600 = vmatpush1.msra.mxu0 %v278
    %601 = vmatprep.subr.mxu0 0.0
    %602 = vmatpush1.msra.mxu0 %v279
    %603 = vmatprep.subr.mxu0 0.0
    %604 = vmatpush1.msra.mxu0 %v280
    %605 = vmatprep.subr.mxu0 0.0
    %606 = vmatpush1.msra.mxu0 %v281
    %607 = vmatprep.subr.mxu0 0.0
    %608 = vmatpush1.msra.mxu0 %v282
    %609 = vmatprep.subr.mxu0 0.0
    %610 = vmatpush1.msra.mxu0 %v283
    %611 = vmatprep.subr.mxu0 0.0
    %612 = vmatpush1.msra.mxu0 %v284
    %613 = vmatprep.subr.mxu0 0.0
    %614 = vmatpush1.msra.mxu0 %v285
    %615 = vmatprep.subr.mxu0 0.0
    %616 = vmatpush1.msra.mxu0 %v286
    %617 = vmatprep.subr.mxu0 0.0
    %618 = vmatpush1.msra.mxu0 %v287
    %619 = vmatprep.subr.mxu0 0.0
    %620 = vmatpush1.msra.mxu0 %v288
    %621 = vmatprep.subr.mxu0 0.0
    %622 = vmatpush1.msra.mxu0 %v289
    %623 = vmatprep.subr.mxu0 0.0
    %624 = vmatpush1.msra.mxu0 %v290
    %625 = vmatprep.subr.mxu0 0.0
    %626 = vmatpush1.msra.mxu0 %v291
    %627 = vmatprep.subr.mxu0 0.0
    %628 = vmatpush1.msra.mxu0 %v292
    %629 = vmatprep.subr.mxu0 0.0
    %630 = vmatpush1.msra.mxu0 %v293
    %631 = vmatprep.subr.mxu0 0.0
    %632 = vmatpush1.msra.mxu0 %v294
    %633 = vmatprep.subr.mxu0 0.0
    %634 = vmatpush1.msra.mxu0 %v295
    %635 = vmatprep.subr.mxu0 0.0
    %636 = vmatpush1.msra.mxu0 %v296
    %637 = vmatprep.subr.mxu0 0.0
    %638 = vmatpush1.msra.mxu0 %v297
    %639 = vmatprep.subr.mxu0 0.0
    %640 = vmatpush1.msra.mxu0 %v298
    %641 = vmatprep.subr.mxu0 0.0
    %642 = vmatpush1.msra.mxu0 %v299
    %643 = vmatprep.subr.mxu0 0.0
    %644 = vmatpush1.msra.mxu0 %v300
    %645 = vmatprep.subr.mxu0 0.0
    %646 = vmatpush1.msra.mxu0 %v301
    %647 = vmatprep.mubr.f32.mxu0 %v101
    %648 = vmatmul.mubr.f32.gmra.mrb[0].mxu0 %v93
    %v649 = vpop.f32.mrb[0].mxu0
    %v650 = vadd.f32 %v580, %v649
    %v651 = vpop.f32.mrb[0].mxu0
    %652 = vdwg.mxu0
    %653 = vmatprep.subr.mxu0 0.0
    %654 = vmatpush1.msra.mxu0 %v302
    %655 = vmatprep.subr.mxu0 0.0
    %656 = vmatpush1.msra.mxu0 %v303
    %657 = vmatprep.subr.mxu0 0.0
    %658 = vmatpush1.msra.mxu0 %v304
    %659 = vmatprep.subr.mxu0 0.0
    %660 = vmatpush1.msra.mxu0 %v305
    %661 = vmatprep.subr.mxu0 0.0
    %662 = vmatpush1.msra.mxu0 %v306
    %663 = vmatprep.subr.mxu0 0.0
    %664 = vmatpush1.msra.mxu0 %v307
    %665 = vmatprep.subr.mxu0 0.0
    %666 = vmatpush1.msra.mxu0 %v308
    %667 = vmatprep.subr.mxu0 0.0
    %668 = vmatpush1.msra.mxu0 %v309
    %669 = vmatprep.subr.mxu0 0.0
    %670 = vmatpush1.msra.mxu0 %v310
    %671 = vmatprep.subr.mxu0 0.0
    %672 = vmatpush1.msra.mxu0 %v311
    %673 = vmatprep.subr.mxu0 0.0
    %674 = vmatpush1.msra.mxu0 %v312
    %675 = vmatprep.subr.mxu0 0.0
    %676 = vmatpush1.msra.mxu0 %v313
    %677 = vmatprep.subr.mxu0 0.0
    %678 = vmatpush1.msra.mxu0 %v314
    %679 = vmatprep.subr.mxu0 0.0
    %680 = vmatpush1.msra.mxu0 %v315
    %681 = vmatprep.subr.mxu0 0.0
    %682 = vmatpush1.msra.mxu0 %v316
    %683 = vmatprep.subr.mxu0 0.0
    %684 = vmatpush1.msra.mxu0 %v317
    %685 = vmatprep.subr.mxu0 0.0
    %686 = vmatpush1.msra.mxu0 %v318
    %687 = vmatprep.subr.mxu0 0.0
    %688 = vmatpush1.msra.mxu0 %v319
    %689 = vmatprep.subr.mxu0 0.0
    %690 = vmatpush1.msra.mxu0 %v320
    %691 = vmatprep.subr.mxu0 0.0
    %692 = vmatpush1.msra.mxu0 %v321
    %693 = vmatprep.subr.mxu0 0.0
    %694 = vmatpush1.msra.mxu0 %v322
    %695 = vmatprep.subr.mxu0 0.0
    %696 = vmatpush1.msra.mxu0 %v323
    %697 = vmatprep.subr.mxu0 0.0
    %698 = vmatpush1.msra.mxu0 %v324
    %699 = vmatprep.subr.mxu0 0.0
    %700 = vmatpush1.msra.mxu0 %v325
    %701 = vmatprep.subr.mxu0 0.0
    %702 = vmatpush1.msra.mxu0 %v326
    %703 = vmatprep.subr.mxu0 0.0
    %704 = vmatpush1.msra.mxu0 %v327
    %705 = vmatprep.subr.mxu0 0.0
    %706 = vmatpush1.msra.mxu0 %v328
    %707 = vmatprep.subr.mxu0 0.0
    %708 = vmatpush1.msra.mxu0 %v329
    %709 = vmatprep.subr.mxu0 0.0
    %710 = vmatpush1.msra.mxu0 %v330
    %711 = vmatprep.subr.mxu0 0.0
    %712 = vmatpush1.msra.mxu0 %v331
    %713 = vmatprep.subr.mxu0 0.0
    %714 = vmatpush1.msra.mxu0 %v332
    %715 = vmatprep.subr.mxu0 0.0
    %716 = vmatpush1.msra.mxu0 %v333
    %717 = vmatprep.mubr.f32.mxu0 %v102
    %718 = vmatmul.mubr.f32.gmra.mrb[0].mxu0 %v100
    %v719 = vpop.f32.mrb[0].mxu0
    %v720 = vadd.f32 %v650, %v719
    %v721 = vpop.f32.mrb[0].mxu0
    %722 = vdwg.mxu0
    %723 = vmatprep.subr.mxu0 0.0
    %724 = vmatpush1.msra.mxu0 %v334
    %725 = vmatprep.subr.mxu0 0.0
    %726 = vmatpush1.msra.mxu0 %v335
    %727 = vmatprep.subr.mxu0 0.0
    %728 = vmatpush1.msra.mxu0 %v336
    %729 = vmatprep.subr.mxu0 0.0
    %730 = vmatpush1.msra.mxu0 %v337
    %731 = vmatprep.subr.mxu0 0.0
    %732 = vmatpush1.msra.mxu0 %v338
    %733 = vmatprep.subr.mxu0 0.0
    %734 = vmatpush1.msra.mxu0 %v339
    %735 = vmatprep.subr.mxu0 0.0
    %736 = vmatpush1.msra.mxu0 %v340
    %737 = vmatprep.subr.mxu0 0.0
    %738 = vmatpush1.msra.mxu0 %v341
    %739 = vmatprep.subr.mxu0 0.0
    %740 = vmatpush1.msra.mxu0 %v342
    %741 = vmatprep.subr.mxu0 0.0
    %742 = vmatpush1.msra.mxu0 %v343
    %743 = vmatprep.subr.mxu0 0.0
    %744 = vmatpush1.msra.mxu0 %v344
    %745 = vmatprep.subr.mxu0 0.0
    %746 = vmatpush1.msra.mxu0 %v345
    %747 = vmatprep.subr.mxu0 0.0
    %748 = vmatpush1.msra.mxu0 %v346
    %749 = vmatprep.subr.mxu0 0.0
    %750 = vmatpush1.msra.mxu0 %v347
    %751 = vmatprep.subr.mxu0 0.0
    %752 = vmatpush1.msra.mxu0 %v348
    %753 = vmatprep.subr.mxu0 0.0
    %754 = vmatpush1.msra.mxu0 %v349
    %755 = vmatprep.subr.mxu0 0.0
    %756 = vmatpush1.msra.mxu0 %v350
    %757 = vmatprep.subr.mxu0 0.0
    %758 = vmatpush1.msra.mxu0 %v351
    %759 = vmatprep.subr.mxu0 0.0
    %760 = vmatpush1.msra.mxu0 %v352
    %761 = vmatprep.subr.mxu0 0.0
    %762 = vmatpush1.msra.mxu0 %v353
    %763 = vmatprep.subr.mxu0 0.0
    %764 = vmatpush1.msra.mxu0 %v354
    %765 = vmatprep.subr.mxu0 0.0
    %766 = vmatpush1.msra.mxu0 %v355
    %767 = vmatprep.subr.mxu0 0.0
    %768 = vmatpush1.msra.mxu0 %v356
    %769 = vmatprep.subr.mxu0 0.0
    %770 = vmatpush1.msra.mxu0 %v357
    %771 = vmatprep.subr.mxu0 0.0
    %772 = vmatpush1.msra.mxu0 %v358
    %773 = vmatprep.subr.mxu0 0.0
    %774 = vmatpush1.msra.mxu0 %v359
    %775 = vmatprep.subr.mxu0 0.0
    %776 = vmatpush1.msra.mxu0 %v360
    %777 = vmatprep.subr.mxu0 0.0
    %778 = vmatpush1.msra.mxu0 %v361
    %779 = vmatprep.subr.mxu0 0.0
    %780 = vmatpush1.msra.mxu0 %v362
    %781 = vmatprep.subr.mxu0 0.0
    %782 = vmatpush1.msra.mxu0 %v363
    %783 = vmatprep.subr.mxu0 0.0
    %784 = vmatpush1.msra.mxu0 %v364
    %785 = vmatprep.subr.mxu0 0.0
    %786 = vmatpush1.msra.mxu0 %v365
    %787 = vmatprep.mubr.f32.mxu0 %v110
    %788 = vmatmul.mubr.f32.gmra.mrb[0].mxu0 %v109
    %v789 = vpop.f32.mrb[0].mxu0
    %v790 = vadd.f32 %v720, %v789
    %v791 = vpop.f32.mrb[0].mxu0
    %792 = vdwg.mxu0
    %793 = vst [vmem:[#allocation7] sm:$0x3] %v790
    // Predicated region
    $region22: #{tpu_custom_call.1} parent=1 // pred_check
      _
    $region23: #{tpu_custom_call.1} parent=1 // pred_check_branch
      %795 = sbr.rel (0) target = $region25
    $region24: #{tpu_custom_call.1} parent=1 // pred_region
      %s797 = ssub.s32 32, 32
      %798 = vsyncadd [#allocation4], %s797
      %s800 = sshll.u32 [#allocation7], 4
      %s801 = int_to_ptr.vmem [resolvable:$true] %s800
      %803 = dma.vmem_to_hbm [thread:$0]  %s801, 32, %s3, [#allocation4]
    $region25: #{tpu_custom_call.1} parent=1 // pred_fallthru
      _
    // Predicated region
    $region26: #{tpu_custom_call.1} parent=1 // pred_check
      _
    $region27: #{tpu_custom_call.1} parent=1 // pred_check_branch
      %805 = sbr.rel (0) target = $region29
    $region28: #{tpu_custom_call.1} parent=1 // pred_region
      %s807 = ssub.s32 384, 384
      %808 = vsyncadd [#allocation9], %s807
      %s810 = sshll.u32 [#allocation8], 4
      %s811 = int_to_ptr.vmem [resolvable:$true] %s810
      %813 = dma.vmem_to_hbm [thread:$0]  %s811, 384, %s4, [#allocation9]
    $region29: #{tpu_custom_call.1} parent=1 // pred_fallthru
      _
    // Predicated region
    $region30: #{tpu_custom_call.1} parent=1 // pred_check
      _
    $region31: #{tpu_custom_call.1} parent=1 // pred_check_branch
      %815 = sbr.rel (0) target = $region33
    $region32: #{tpu_custom_call.1} parent=1 // pred_region
      %816 = dma.done [#allocation4], 32
    $region33: #{tpu_custom_call.1} parent=1 // pred_fallthru
      _
    // Predicated region
    $region34: #{tpu_custom_call.1} parent=1 // pred_check
      _
    $region35: #{tpu_custom_call.1} parent=1 // pred_check_branch
      %818 = sbr.rel (0) target = $region37
    $region36: #{tpu_custom_call.1} parent=1 // pred_region
      %819 = dma.done [#allocation9], 384
    $region37: #{tpu_custom_call.1} parent=1 // pred_fallthru
      _
    %820 = vsyncpa [#allocation3], 1
    %821 = vsyncpa [#allocation6], 1
    %822 = vsyncpa [#allocation4], 1
    %823 = vsyncpa [#allocation9], 1

</llo_original>
